<compile_context>
chip_gen: v5e
topology: v5e:2x2
jax: 0.10.0
libtpu: 0.0.40
codegen_flags: <defaults>
</compile_context>

<pallas_src>
import functools

import jax
import jax.numpy as jnp
from jax import lax
from jax.experimental import pallas as pl
from jax.experimental.pallas import tpu as pltpu

_H = 128          # hidden width padded from 100
_IN_PAD = 8       # input features padded from 3 (sublane granularity)
_OUT_PAD = 8      # output rows padded from 3 (sublane granularity)
_CHUNK = 512      # in-kernel sub-chunk (columns) for software pipelining


def _round_up(v, m):
    return ((v + m - 1) // m) * m


def _device_kind():
    try:
        return jax.devices()[0].device_kind.lower()
    except Exception:  # pragma: no cover - defensive
        return ""


def _default_use_mxu_layer1():
    # v5e: keep layer 1 on the VPU (smaller, busier MXU). v6e/v7x: use the MXU.
    return "v5" not in _device_kind()


def _default_tn_max():
    return 4096 if "v5" in _device_kind() else 8192


def _choose_tile(n, tn_max):
    """Pick a lane-tile (multiple of _CHUNK for n>_CHUNK) giving ~2-8 even steps."""
    n_aligned = _round_up(max(n, 1), 128)
    if n_aligned <= _CHUNK:
        return n_aligned                      # tiny batch: single small step
    for steps in (2, 4, 6, 8):                # prefer even step counts (v7x)
        tn = _round_up(pl.cdiv(n_aligned, steps), _CHUNK)
        if tn <= tn_max:
            return tn
    return tn_max                              # very large N: cap tile size


def _mlp_kernel(x_ref, w1_ref, b1_ref, w2_ref, b2_ref, w3_ref, b3_ref, o_ref,
                *, chunk, n_chunks, use_mxu_layer1):
    # x_ref : (8, TN)    f32   batch on lanes, rows 3..7 are zero padding
    # w1_ref: (128, 8)   f32   b1_ref: (128, 1) f32
    # w2_ref: (128, 128) bf16  b2_ref: (128, 1) f32
    # w3_ref: (8, 128)   bf16  b3_ref: (8, 1)   f32
    # o_ref : (8, TN)    f32
    w1 = w1_ref[...]
    b1 = b1_ref[...]
    w1_bf = w1.astype(jnp.bfloat16)
    w2 = w2_ref[...]
    b2 = b2_ref[...]
    w3 = w3_ref[...]
    b3 = b3_ref[...]

    def body(j, carry):
        c = pl.multiple_of(j * chunk, chunk)
        x = x_ref[:, pl.ds(c, chunk)]                       # (8, chunk) f32

        if use_mxu_layer1:
            # Layer 1 on the MXU: (128,8) x (8,chunk), bf16 operands, f32 acc.
            h1 = jnp.dot(w1_bf, x.astype(jnp.bfloat16),
                         preferred_element_type=jnp.float32) + b1
        else:
            # Layer 1 on the VPU (v5e): three broadcast FMAs over K=3.
            h1 = (w1[:, 0:1] * x[0:1, :]
                  + w1[:, 1:2] * x[1:2, :]
                  + w1[:, 2:3] * x[2:3, :]
                  + b1)
        h1 = jnp.maximum(h1, 0.0)

        # Layer 2: 128x128 MXU matmul, bf16 operands, f32 accumulation.
        h2 = jnp.dot(w2, h1.astype(jnp.bfloat16),
                     preferred_element_type=jnp.float32) + b2
        h2 = jnp.maximum(h2, 0.0)

        # Layer 3: (8,128) x (128,chunk) MXU matmul.
        y = jnp.dot(w3, h2.astype(jnp.bfloat16),
                    preferred_element_type=jnp.float32) + b3
        o_ref[:, pl.ds(c, chunk)] = y
        return carry

    lax.fori_loop(0, n_chunks, body, 0, unroll=True)


def pad_params(params):
    """Transpose to (out, in) layout and zero-pad to MXU/vreg-friendly shapes."""
    w1, b1, w2, b2, w3, b3 = params          # (in, out) / (1, out) layout
    w1t = jnp.zeros((_H, _IN_PAD), jnp.float32).at[:100, :3].set(w1.T)
    b1t = jnp.zeros((_H, 1), jnp.float32).at[:100, :].set(b1.T)
    w2t = jnp.zeros((_H, _H), jnp.float32).at[:100, :100].set(w2.T).astype(jnp.bfloat16)
    b2t = jnp.zeros((_H, 1), jnp.float32).at[:100, :].set(b2.T)
    w3t = jnp.zeros((_OUT_PAD, _H), jnp.float32).at[:3, :100].set(w3.T).astype(jnp.bfloat16)
    b3t = jnp.zeros((_OUT_PAD, 1), jnp.float32).at[:3, :].set(b3.T)
    return w1t, b1t, w2t, b2t, w3t, b3t


def mlp_forward(x, padded_params, *, tn_max=None, use_mxu_layer1=None):
    """x: (N, 3) (or (3,)) float32.  Returns squeeze(MLP(x)) like the PyTorch model."""
    w1t, b1t, w2t, b2t, w3t, b3t = padded_params
    if x.ndim == 1:
        x = x[None, :]
    n = x.shape[0]
    if n == 0:                                # degenerate batch guard
        return jnp.squeeze(jnp.zeros((0, 3), jnp.float32))

    if tn_max is None:
        tn_max = _default_tn_max()
    if use_mxu_layer1 is None:
        use_mxu_layer1 = _default_use_mxu_layer1()

    tn = _choose_tile(n, tn_max)
    n_pad = _round_up(n, tn)
    chunk = min(_CHUNK, tn)
    n_chunks = tn // chunk

    # Lane-major, sublane-aligned input: rows 0..2 hold features, rows 3..7 zero.
    xt = jnp.zeros((_IN_PAD, n_pad), jnp.float32).at[:3, :n].set(
        x.T.astype(jnp.float32))

    kernel = functools.partial(_mlp_kernel, chunk=chunk, n_chunks=n_chunks,
                               use_mxu_layer1=use_mxu_layer1)

    flops = 2 * n_pad * (_IN_PAD * _H + _H * _H + _H * _OUT_PAD)
    bytes_accessed = (n_pad * (_IN_PAD + _OUT_PAD) * 4          # x + out
                      + _H * _IN_PAD * 4 + _H * _H * 2 + _OUT_PAD * _H * 2
                      + (_H + _H + _OUT_PAD) * 4)               # weights/biases

    const = lambda i: (0, 0)   # weights/biases stay VMEM-resident across the grid
    out_t = pl.pallas_call(
        kernel,
        out_shape=jax.ShapeDtypeStruct((_OUT_PAD, n_pad), jnp.float32),
        grid=(n_pad // tn,),
        in_specs=[
            pl.BlockSpec((_IN_PAD, tn), lambda i: (0, i)),
            pl.BlockSpec((_H, _IN_PAD), const),
            pl.BlockSpec((_H, 1), const),
            pl.BlockSpec((_H, _H), const),
            pl.BlockSpec((_H, 1), const),
            pl.BlockSpec((_OUT_PAD, _H), const),
            pl.BlockSpec((_OUT_PAD, 1), const),
        ],
        out_specs=pl.BlockSpec((_OUT_PAD, tn), lambda i: (0, i)),
        compiler_params=pltpu.CompilerParams(
            dimension_semantics=("parallel",),
            vmem_limit_bytes=32 * 1024 * 1024),
        cost_estimate=pl.CostEstimate(flops=flops, transcendentals=0,
                                      bytes_accessed=bytes_accessed),
    )(xt, w1t, b1t, w2t, b2t, w3t, b3t)

    y = out_t[:3, :n].T        # drop row/column padding, back to (N, 3)
    # PyTorch's .squeeze(): drop all size-1 dims.
    return jnp.squeeze(y)


def init_params(key):
    """Deterministic init mimicking nn.Linear's U(-1/sqrt(fan_in), +1/sqrt(fan_in))."""
    def linear(key, fan_in, fan_out):
        kw, kb = jax.random.split(key)
        bound = 1.0 / jnp.sqrt(float(fan_in))
        w = jax.random.uniform(kw, (fan_in, fan_out), jnp.float32, -bound, bound)
        b = jax.random.uniform(kb, (1, fan_out), jnp.float32, -bound, bound)
        return w, b

    k1, k2, k3 = jax.random.split(key, 3)
    w1, b1 = linear(k1, 3, 100)
    w2, b2 = linear(k2, 100, 100)
    w3, b3 = linear(k3, 100, 3)
    return (w1, b1, w2, b2, w3, b3)


def reference_forward(x, params, use_mxu_layer1):
    """Pure-JAX reference matching the kernel's bf16-operand / f32-accumulate dots."""
    w1, b1, w2, b2, w3, b3 = params
    x2 = x[None, :] if x.ndim == 1 else x
    if use_mxu_layer1:
        h = jnp.dot(x2.astype(jnp.bfloat16), w1.astype(jnp.bfloat16),
                    preferred_element_type=jnp.float32) + b1
    else:
        h = x2 @ w1 + b1
    h = jnp.maximum(h, 0.0)
    h = jnp.maximum(
        jnp.dot(h.astype(jnp.bfloat16), w2.astype(jnp.bfloat16),
                preferred_element_type=jnp.float32) + b2, 0.0)
    y = jnp.dot(h.astype(jnp.bfloat16), w3.astype(jnp.bfloat16),
                preferred_element_type=jnp.float32) + b3
    return jnp.squeeze(y)


if __name__ == "__main__":
    key = jax.random.PRNGKey(0)
    kx, kx2, kx3, kp = jax.random.split(key, 4)

    params = init_params(kp)
    padded = pad_params(params)
    use_mxu = _default_use_mxu_layer1()

    # Small batch, matching Linear(3, ...) input.
    x_small = jax.random.normal(kx, (8, 3), dtype=jnp.float32)
    y_small = jax.block_until_ready(mlp_forward(x_small, padded))
    y_small_ref = reference_forward(x_small, params, use_mxu)
    assert y_small.shape == (8, 3)
    assert jnp.allclose(y_small, y_small_ref, atol=1e-2, rtol=1e-2)

    # Mid-size batch: exercises a multi-step (even) grid, chunked body and
    # tail padding.
    x_mid = jax.random.normal(kx2, (1300, 3), dtype=jnp.float32)
    y_mid = jax.block_until_ready(mlp_forward(x_mid, padded))
    y_mid_ref = reference_forward(x_mid, params, use_mxu)
    assert y_mid.shape == (1300, 3)
    assert jnp.allclose(y_mid, y_mid_ref, atol=1e-2, rtol=1e-2)

    # 1-D input: squeeze() must drop the singleton batch dim like PyTorch.
    x_1d = jax.random.normal(kx3, (3,), dtype=jnp.float32)
    y_1d = jax.block_until_ready(mlp_forward(x_1d, padded))
    y_1d_ref = reference_forward(x_1d, params, use_mxu)
    assert y_1d.shape == (3,)
    assert jnp.allclose(y_1d, y_1d_ref, atol=1e-2, rtol=1e-2)

    print("KERNEL_OK")
</pallas_src>

<mosaic_0001>
module attributes {stable_mosaic.version = 11 : i64} {
  func.func @_mlp_kernel(%arg0: i32, %arg1: memref<8x128xf32, #tpu.memory_space<vmem>>, %arg2: memref<128x8xf32, #tpu.memory_space<vmem>>, %arg3: memref<128x1xf32, #tpu.memory_space<vmem>>, %arg4: memref<128x128xbf16, #tpu.memory_space<vmem>>, %arg5: memref<128x1xf32, #tpu.memory_space<vmem>>, %arg6: memref<8x128xbf16, #tpu.memory_space<vmem>>, %arg7: memref<8x1xf32, #tpu.memory_space<vmem>>, %arg8: memref<8x128xf32, #tpu.memory_space<vmem>>) attributes {dimension_semantics = [#tpu.dimension_semantics<parallel>], iteration_bounds = array<i64: 1>, scalar_prefetch = 0 : i64, scratch_operands = 0 : i64, tpu.core_type = #tpu.core_type<tc>, window_params = [{transform_indices = @transform_0, window_bounds = array<i64: 8, 128>}, {pipeline_mode = #tpu.pipeline_mode<synchronous>, transform_indices = @transform_1, window_bounds = array<i64: 128, 8>}, {pipeline_mode = #tpu.pipeline_mode<synchronous>, transform_indices = @transform_2, window_bounds = array<i64: 128, 1>}, {pipeline_mode = #tpu.pipeline_mode<synchronous>, transform_indices = @transform_3, window_bounds = array<i64: 128, 128>}, {pipeline_mode = #tpu.pipeline_mode<synchronous>, transform_indices = @transform_4, window_bounds = array<i64: 128, 1>}, {pipeline_mode = #tpu.pipeline_mode<synchronous>, transform_indices = @transform_5, window_bounds = array<i64: 8, 128>}, {pipeline_mode = #tpu.pipeline_mode<synchronous>, transform_indices = @transform_6, window_bounds = array<i64: 8, 1>}, {transform_indices = @transform_7, window_bounds = array<i64: 8, 128>}]} {
    %c0 = arith.constant 0 : index
    %c0_0 = arith.constant 0 : index
    %0 = vector.load %arg2[%c0, %c0_0] : memref<128x8xf32, #tpu.memory_space<vmem>>, vector<128x8xf32>
    %c0_1 = arith.constant 0 : index
    %c0_2 = arith.constant 0 : index
    %1 = vector.load %arg3[%c0_1, %c0_2] : memref<128x1xf32, #tpu.memory_space<vmem>>, vector<128x1xf32>
    %2 = arith.truncf %0 : vector<128x8xf32> to vector<128x8xbf16>
    %c0_3 = arith.constant 0 : index
    %c0_4 = arith.constant 0 : index
    %3 = vector.load %arg4[%c0_3, %c0_4] : memref<128x128xbf16, #tpu.memory_space<vmem>>, vector<128x128xbf16>
    %c0_5 = arith.constant 0 : index
    %c0_6 = arith.constant 0 : index
    %4 = vector.load %arg5[%c0_5, %c0_6] : memref<128x1xf32, #tpu.memory_space<vmem>>, vector<128x1xf32>
    %c0_7 = arith.constant 0 : index
    %c0_8 = arith.constant 0 : index
    %5 = vector.load %arg6[%c0_7, %c0_8] : memref<8x128xbf16, #tpu.memory_space<vmem>>, vector<8x128xbf16>
    %c0_9 = arith.constant 0 : index
    %c0_10 = arith.constant 0 : index
    %6 = vector.load %arg7[%c0_9, %c0_10] : memref<8x1xf32, #tpu.memory_space<vmem>>, vector<8x1xf32>
    %c0_i32 = arith.constant 0 : i32
    %c128_i32 = arith.constant 128 : i32
    %7 = arith.muli %c0_i32, %c128_i32 : i32
    %8 = tpu.assume_multiple %7, 128 : i32
    %c0_11 = arith.constant 0 : index
    %9 = arith.index_cast %8 : i32 to index
    %10 = vector.load %arg1[%c0_11, %9] : memref<8x128xf32, #tpu.memory_space<vmem>>, vector<8x128xf32>
    %11 = arith.truncf %10 : vector<8x128xf32> to vector<8x128xbf16>
    %cst = arith.constant dense<0.000000e+00> : vector<128x128xf32>
    %12 = tpu.matmul %2, %11, %cst {dimension_numbers = #tpu.dot_dimension_numbers<[1], [0], [0], [1], [0, 0, 1, 1], [], []>} : vector<128x8xbf16>, vector<8x128xbf16>, vector<128x128xf32> -> vector<128x128xf32>
    %13 = vector.broadcast %1 : vector<128x1xf32> to vector<128x128xf32>
    %14 = arith.addf %12, %13 : vector<128x128xf32>
    %cst_12 = arith.constant 0.000000e+00 : f32
    %15 = vector.broadcast %cst_12 : f32 to vector<128x128xf32>
    %16 = arith.maximumf %14, %15 : vector<128x128xf32>
    %17 = arith.truncf %16 : vector<128x128xf32> to vector<128x128xbf16>
    %cst_13 = arith.constant dense<0.000000e+00> : vector<128x128xf32>
    %18 = tpu.matmul %3, %17, %cst_13 {dimension_numbers = #tpu.dot_dimension_numbers<[1], [0], [0], [1], [0, 0, 1, 1], [], []>} : vector<128x128xbf16>, vector<128x128xbf16>, vector<128x128xf32> -> vector<128x128xf32>
    %19 = vector.broadcast %4 : vector<128x1xf32> to vector<128x128xf32>
    %20 = arith.addf %18, %19 : vector<128x128xf32>
    %cst_14 = arith.constant 0.000000e+00 : f32
    %21 = vector.broadcast %cst_14 : f32 to vector<128x128xf32>
    %22 = arith.maximumf %20, %21 : vector<128x128xf32>
    %23 = arith.truncf %22 : vector<128x128xf32> to vector<128x128xbf16>
    %cst_15 = arith.constant dense<0.000000e+00> : vector<8x128xf32>
    %24 = tpu.matmul %5, %23, %cst_15 {dimension_numbers = #tpu.dot_dimension_numbers<[1], [0], [0], [1], [0, 0, 1, 1], [], []>} : vector<8x128xbf16>, vector<128x128xbf16>, vector<8x128xf32> -> vector<8x128xf32>
    %25 = vector.broadcast %6 : vector<8x1xf32> to vector<8x128xf32>
    %26 = arith.addf %24, %25 : vector<8x128xf32>
    %c0_16 = arith.constant 0 : index
    %27 = arith.index_cast %8 : i32 to index
    %28 = vector.load %arg8[%c0_16, %27] : memref<8x128xf32, #tpu.memory_space<vmem>>, vector<8x128xf32>
    tpu.vector_store %arg8[%c0_16, %27], %26 {strides = array<i32>} : memref<8x128xf32, #tpu.memory_space<vmem>>, vector<8x128xf32>,
    %c1_i32 = arith.constant 1 : i32
    return
  }
  func.func @transform_0(%arg0: i32) -> (i32, i32) {
    %c0_i32 = arith.constant 0 : i32
    %c0_i32_0 = arith.constant 0 : i32
    return %c0_i32, %arg0 : i32, i32
  }
  func.func @transform_1(%arg0: i32) -> (i32, i32) {
    %c0_i32 = arith.constant 0 : i32
    %c0_i32_0 = arith.constant 0 : i32
    %c0_i32_1 = arith.constant 0 : i32
    return %c0_i32, %c0_i32_0 : i32, i32
  }
  func.func @transform_2(%arg0: i32) -> (i32, i32) {
    %c0_i32 = arith.constant 0 : i32
    %c0_i32_0 = arith.constant 0 : i32
    %c0_i32_1 = arith.constant 0 : i32
    return %c0_i32, %c0_i32_0 : i32, i32
  }
  func.func @transform_3(%arg0: i32) -> (i32, i32) {
    %c0_i32 = arith.constant 0 : i32
    %c0_i32_0 = arith.constant 0 : i32
    %c0_i32_1 = arith.constant 0 : i32
    return %c0_i32, %c0_i32_0 : i32, i32
  }
  func.func @transform_4(%arg0: i32) -> (i32, i32) {
    %c0_i32 = arith.constant 0 : i32
    %c0_i32_0 = arith.constant 0 : i32
    %c0_i32_1 = arith.constant 0 : i32
    return %c0_i32, %c0_i32_0 : i32, i32
  }
  func.func @transform_5(%arg0: i32) -> (i32, i32) {
    %c0_i32 = arith.constant 0 : i32
    %c0_i32_0 = arith.constant 0 : i32
    %c0_i32_1 = arith.constant 0 : i32
    return %c0_i32, %c0_i32_0 : i32, i32
  }
  func.func @transform_6(%arg0: i32) -> (i32, i32) {
    %c0_i32 = arith.constant 0 : i32
    %c0_i32_0 = arith.constant 0 : i32
    %c0_i32_1 = arith.constant 0 : i32
    return %c0_i32, %c0_i32_0 : i32, i32
  }
  func.func @transform_7(%arg0: i32) -> (i32, i32) {
    %c0_i32 = arith.constant 0 : i32
    %c0_i32_0 = arith.constant 0 : i32
    return %c0_i32, %arg0 : i32, i32
  }
}

</mosaic_0001>

<llo_original>
// kernel: tpu_custom_call.1
$region0: #{tpu_custom_call.1}
  #allocation0 [shape = 'u32[]', space=smem, size = 0x4, offset = 0x4, fixed_abs, tag = 'smem constant byte address 0x4 - core index']
  #allocation1 [shape = 'u32[72,128]{1,0:T(1,128)}', space=vmem, size = 0x9000, scoped, tag = 'internal scratch']
  %s0 = inlined_call_operand.vmem [shape: f32[8,128], index: 0, kind: input, shape index: {}]
  %s1 = inlined_call_operand.vmem [shape: f32[128,8], index: 1, kind: input, shape index: {}]
  %s2 = inlined_call_operand.vmem [shape: f32[128,1], index: 2, kind: input, shape index: {}]
  %s3 = inlined_call_operand.vmem [shape: bf16[128,128], index: 3, kind: input, shape index: {}]
  %s4 = inlined_call_operand.vmem [shape: f32[128,1], index: 4, kind: input, shape index: {}]
  %s5 = inlined_call_operand.vmem [shape: bf16[8,128], index: 5, kind: input, shape index: {}]
  %s6 = inlined_call_operand.vmem [shape: f32[8,1], index: 6, kind: input, shape index: {}]
  %s7 = inlined_call_operand.hbm [shape: f32[8,128], index: 7, kind: output, shape index: {}]
  %s8 = sld [smem:[#allocation0]]
  $region38: #{tpu_custom_call.1} parent=0
    _
  %s10 = ssub.s32 1, %s8
  %s11 = scalar_select 0, %s10, %s8
  $region1: #{tpu_custom_call.1} parent=0
    #allocation2 [shape = 'u8[4096]{0}', space=vmem, size = 0x1000, scoped, tag = 'output window, operand 0, single buffered']
    #allocation3 [shape = 's32[1]{0}', space=sflag, size = 0x4, scoped, tag = 'scoped memory for tpu_custom_call.1']
    %12 = vsyncpa [#allocation3], 0
    // Predicated region
    $region2: #{tpu_custom_call.1} parent=1 // pred_check
      _
    $region3: #{tpu_custom_call.1} parent=1 // pred_check_branch
      %14 = sbr.rel (0) target = $region5
    $region4: #{tpu_custom_call.1} parent=1 // pred_region
      _
    $region5: #{tpu_custom_call.1} parent=1 // pred_fallthru
      _
    // Predicated region
    $region6: #{tpu_custom_call.1} parent=1 // pred_check
      _
    $region7: #{tpu_custom_call.1} parent=1 // pred_check_branch
      %16 = sbr.rel (0) target = $region9
    $region8: #{tpu_custom_call.1} parent=1 // pred_region
      _
    $region9: #{tpu_custom_call.1} parent=1 // pred_fallthru
      _
    // Predicated region
    $region10: #{tpu_custom_call.1} parent=1 // pred_check
      _
    $region11: #{tpu_custom_call.1} parent=1 // pred_check_branch
      %18 = sbr.rel (0) target = $region13
    $region12: #{tpu_custom_call.1} parent=1 // pred_region
      _
    $region13: #{tpu_custom_call.1} parent=1 // pred_fallthru
      _
    // Predicated region
    $region14: #{tpu_custom_call.1} parent=1 // pred_check
      _
    $region15: #{tpu_custom_call.1} parent=1 // pred_check_branch
      %20 = sbr.rel (0) target = $region17
    $region16: #{tpu_custom_call.1} parent=1 // pred_region
      _
    $region17: #{tpu_custom_call.1} parent=1 // pred_fallthru
      _
    // Predicated region
    $region18: #{tpu_custom_call.1} parent=1 // pred_check
      _
    $region19: #{tpu_custom_call.1} parent=1 // pred_check_branch
      %22 = sbr.rel (0) target = $region21
    $region20: #{tpu_custom_call.1} parent=1 // pred_region
      _
    $region21: #{tpu_custom_call.1} parent=1 // pred_fallthru
      _
    // Predicated region
    $region22: #{tpu_custom_call.1} parent=1 // pred_check
      _
    $region23: #{tpu_custom_call.1} parent=1 // pred_check_branch
      %24 = sbr.rel (0) target = $region25
    $region24: #{tpu_custom_call.1} parent=1 // pred_region
      _
    $region25: #{tpu_custom_call.1} parent=1 // pred_fallthru
      _
    // Predicated region
    $region26: #{tpu_custom_call.1} parent=1 // pred_check
      _
    $region27: #{tpu_custom_call.1} parent=1 // pred_check_branch
      %26 = sbr.rel (0) target = $region29
    $region28: #{tpu_custom_call.1} parent=1 // pred_region
      _
    $region29: #{tpu_custom_call.1} parent=1 // pred_fallthru
      _
    %v28 = vld [vmem:[%s1] sm:$0xff]
    %v29 = vld [vmem:[%s1 + $0x8] sm:$0xff]
    %v30 = vld [vmem:[%s1 + $0x10] sm:$0xff]
    %v31 = vld [vmem:[%s1 + $0x18] sm:$0xff]
    %v32 = vld [vmem:[%s1 + $0x20] sm:$0xff]
    %v33 = vld [vmem:[%s1 + $0x28] sm:$0xff]
    %v34 = vld [vmem:[%s1 + $0x30] sm:$0xff]
    %v35 = vld [vmem:[%s1 + $0x38] sm:$0xff]
    %v36 = vld [vmem:[%s1 + $0x40] sm:$0xff]
    %v37 = vld [vmem:[%s1 + $0x48] sm:$0xff]
    %v38 = vld [vmem:[%s1 + $0x50] sm:$0xff]
    %v39 = vld [vmem:[%s1 + $0x58] sm:$0xff]
    %v40 = vld [vmem:[%s1 + $0x60] sm:$0xff]
    %v41 = vld [vmem:[%s1 + $0x68] sm:$0xff]
    %v42 = vld [vmem:[%s1 + $0x70] sm:$0xff]
    %v43 = vld [vmem:[%s1 + $0x78] sm:$0xff]
    %v44 = vld [vmem:[%s2] sm:$0xff]
    %v45 = vld [vmem:[%s2 + $0x8] sm:$0xff]
    %v46 = vld [vmem:[%s2 + $0x10] sm:$0xff]
    %v47 = vld [vmem:[%s2 + $0x18] sm:$0xff]
    %v48 = vld [vmem:[%s2 + $0x20] sm:$0xff]
    %v49 = vld [vmem:[%s2 + $0x28] sm:$0xff]
    %v50 = vld [vmem:[%s2 + $0x30] sm:$0xff]
    %v51 = vld [vmem:[%s2 + $0x38] sm:$0xff]
    %v52 = vld [vmem:[%s2 + $0x40] sm:$0xff]
    %v53 = vld [vmem:[%s2 + $0x48] sm:$0xff]
    %v54 = vld [vmem:[%s2 + $0x50] sm:$0xff]
    %v55 = vld [vmem:[%s2 + $0x58] sm:$0xff]
    %v56 = vld [vmem:[%s2 + $0x60] sm:$0xff]
    %v57 = vld [vmem:[%s2 + $0x68] sm:$0xff]
    %v58 = vld [vmem:[%s2 + $0x70] sm:$0xff]
    %v59 = vld [vmem:[%s2 + $0x78] sm:$0xff]
    %v60 = vpack.c.bf16 %v29, %v28
    %v61 = vpack.c.bf16 %v31, %v30
    %v62 = vpack.c.bf16 %v33, %v32
    %v63 = vpack.c.bf16 %v35, %v34
    %v64 = vpack.c.bf16 %v37, %v36
    %v65 = vpack.c.bf16 %v39, %v38
    %v66 = vpack.c.bf16 %v41, %v40
    %v67 = vpack.c.bf16 %v43, %v42
    %v68 = vld [vmem:[%s3] sm:$0xf]
    %v69 = vld [vmem:[%s3 + $0x4] sm:$0xf]
    %v70 = vld [vmem:[%s3 + $0x8] sm:$0xf]
    %v71 = vld [vmem:[%s3 + $0xc] sm:$0xf]
    %v72 = vld [vmem:[%s3 + $0x10] sm:$0xf]
    %v73 = vld [vmem:[%s3 + $0x14] sm:$0xf]
    %v74 = vld [vmem:[%s3 + $0x18] sm:$0xf]
    %v75 = vld [vmem:[%s3 + $0x1c] sm:$0xf]
    %v76 = vld [vmem:[%s3 + $0x20] sm:$0xf]
    %v77 = vld [vmem:[%s3 + $0x24] sm:$0xf]
    %v78 = vld [vmem:[%s3 + $0x28] sm:$0xf]
    %v79 = vld [vmem:[%s3 + $0x2c] sm:$0xf]
    %v80 = vld [vmem:[%s3 + $0x30] sm:$0xf]
    %v81 = vld [vmem:[%s3 + $0x34] sm:$0xf]
    %v82 = vld [vmem:[%s3 + $0x38] sm:$0xf]
    %v83 = vld [vmem:[%s3 + $0x3c] sm:$0xf]
    %v84 = vld [vmem:[%s4] sm:$0xff]
    %v85 = vld [vmem:[%s4 + $0x8] sm:$0xff]
    %v86 = vld [vmem:[%s4 + $0x10] sm:$0xff]
    %v87 = vld [vmem:[%s4 + $0x18] sm:$0xff]
    %v88 = vld [vmem:[%s4 + $0x20] sm:$0xff]
    %v89 = vld [vmem:[%s4 + $0x28] sm:$0xff]
    %v90 = vld [vmem:[%s4 + $0x30] sm:$0xff]
    %v91 = vld [vmem:[%s4 + $0x38] sm:$0xff]
    %v92 = vld [vmem:[%s4 + $0x40] sm:$0xff]
    %v93 = vld [vmem:[%s4 + $0x48] sm:$0xff]
    %v94 = vld [vmem:[%s4 + $0x50] sm:$0xff]
    %v95 = vld [vmem:[%s4 + $0x58] sm:$0xff]
    %v96 = vld [vmem:[%s4 + $0x60] sm:$0xff]
    %v97 = vld [vmem:[%s4 + $0x68] sm:$0xff]
    %v98 = vld [vmem:[%s4 + $0x70] sm:$0xff]
    %v99 = vld [vmem:[%s4 + $0x78] sm:$0xff]
    %v100 = vld [vmem:[%s5] sm:$0xf]
    %v101 = vld [vmem:[%s6] sm:$0xff]
    %v102 = vld [vmem:[%s0] sm:$0xff]
    %v103 = vpack.c.bf16 %v102, %v102
    %105 = vset.pattern.permute.xlu0 0
    %106 = vperm.xlu0 %105, %v44
    %v107 = vpop.permute.xlu0 %106
    %110 = vset.pattern.permute.xlu0 0
    %111 = vperm.xlu0 %110, %v45
    %v112 = vpop.permute.xlu0 %111
    %115 = vset.pattern.permute.xlu0 0
    %116 = vperm.xlu0 %115, %v46
    %v117 = vpop.permute.xlu0 %116
    %120 = vset.pattern.permute.xlu0 0
    %121 = vperm.xlu0 %120, %v47
    %v122 = vpop.permute.xlu0 %121
    %125 = vset.pattern.permute.xlu0 0
    %126 = vperm.xlu0 %125, %v48
    %v127 = vpop.permute.xlu0 %126
    %130 = vset.pattern.permute.xlu0 0
    %131 = vperm.xlu0 %130, %v49
    %v132 = vpop.permute.xlu0 %131
    %135 = vset.pattern.permute.xlu0 0
    %136 = vperm.xlu0 %135, %v50
    %v137 = vpop.permute.xlu0 %136
    %140 = vset.pattern.permute.xlu0 0
    %141 = vperm.xlu0 %140, %v51
    %v142 = vpop.permute.xlu0 %141
    %145 = vset.pattern.permute.xlu0 0
    %146 = vperm.xlu0 %145, %v52
    %v147 = vpop.permute.xlu0 %146
    %150 = vset.pattern.permute.xlu0 0
    %151 = vperm.xlu0 %150, %v53
    %v152 = vpop.permute.xlu0 %151
    %155 = vset.pattern.permute.xlu0 0
    %156 = vperm.xlu0 %155, %v54
    %v157 = vpop.permute.xlu0 %156
    %160 = vset.pattern.permute.xlu0 0
    %161 = vperm.xlu0 %160, %v55
    %v162 = vpop.permute.xlu0 %161
    %165 = vset.pattern.permute.xlu0 0
    %166 = vperm.xlu0 %165, %v56
    %v167 = vpop.permute.xlu0 %166
    %170 = vset.pattern.permute.xlu0 0
    %171 = vperm.xlu0 %170, %v57
    %v172 = vpop.permute.xlu0 %171
    %175 = vset.pattern.permute.xlu0 0
    %176 = vperm.xlu0 %175, %v58
    %v177 = vpop.permute.xlu0 %176
    %180 = vset.pattern.permute.xlu0 0
    %181 = vperm.xlu0 %180, %v59
    %v182 = vpop.permute.xlu0 %181
    %vm184 = vcmask 64512
    %v186 = vsel %vm184, %v60, 0
    %v189 = vsel %vm184, %v61, 0
    %v192 = vsel %vm184, %v62, 0
    %v195 = vsel %vm184, %v63, 0
    %v198 = vsel %vm184, %v64, 0
    %v201 = vsel %vm184, %v65, 0
    %v204 = vsel %vm184, %v66, 0
    %v207 = vsel %vm184, %v67, 0
    %vm209 = vcmask 1043456
    %v211 = vsel %vm209, %v103, 0
    %213 = vmatpush.bf16.msra.mxu0 0
    %214 = vmatpush.bf16.msra.mxu0 0
    %215 = vmatpush.bf16.msra.mxu0 0
    %216 = vmatpush.bf16.msra.mxu0 0
    %217 = vmatpush.bf16.msra.mxu0 0
    %218 = vmatpush.bf16.msra.mxu0 0
    %219 = vmatpush.bf16.msra.mxu0 0
    %220 = vmatpush.bf16.msra.mxu0 %v211
    %221 = vmatmul.bf16.gmra.mxu0 %v186
    %v222 = vpop.f32.mrf.mxu0
    %v223 = vadd.f32 %v107, %v222
    %v224 = vpop.f32.mrf.mxu0
    %v225 = vadd.f32 %v112, %v224
    %226 = vmatmul.bf16.gmra.mxu0 %v189
    %v227 = vpop.f32.mrf.mxu0
    %v228 = vadd.f32 %v117, %v227
    %v229 = vpop.f32.mrf.mxu0
    %v230 = vadd.f32 %v122, %v229
    %231 = vmatmul.bf16.gmra.mxu0 %v192
    %v232 = vpop.f32.mrf.mxu0
    %v233 = vadd.f32 %v127, %v232
    %v234 = vpop.f32.mrf.mxu0
    %v235 = vadd.f32 %v132, %v234
    %236 = vmatmul.bf16.gmra.mxu0 %v195
    %v237 = vpop.f32.mrf.mxu0
    %v238 = vadd.f32 %v137, %v237
    %v239 = vpop.f32.mrf.mxu0
    %v240 = vadd.f32 %v142, %v239
    %241 = vmatmul.bf16.gmra.mxu0 %v198
    %v242 = vpop.f32.mrf.mxu0
    %v243 = vadd.f32 %v147, %v242
    %v244 = vpop.f32.mrf.mxu0
    %v245 = vadd.f32 %v152, %v244
    %246 = vmatmul.bf16.gmra.mxu0 %v201
    %v247 = vpop.f32.mrf.mxu0
    %v248 = vadd.f32 %v157, %v247
    %v249 = vpop.f32.mrf.mxu0
    %v250 = vadd.f32 %v162, %v249
    %251 = vmatmul.bf16.gmra.mxu0 %v204
    %v252 = vpop.f32.mrf.mxu0
    %v253 = vadd.f32 %v167, %v252
    %v254 = vpop.f32.mrf.mxu0
    %v255 = vadd.f32 %v172, %v254
    %256 = vmatmul.bf16.gmra.mxu0 %v207
    %v257 = vpop.f32.mrf.mxu0
    %v258 = vadd.f32 %v177, %v257
    %v259 = vpop.f32.mrf.mxu0
    %v260 = vadd.f32 %v182, %v259
    %261 = vdwg.mxu0
    %v262 = vmax.f32 %v223, 0.0
    %v263 = vmax.f32 %v225, 0.0
    %v264 = vmax.f32 %v228, 0.0
    %v265 = vmax.f32 %v230, 0.0
    %v266 = vmax.f32 %v233, 0.0
    %v267 = vmax.f32 %v235, 0.0
    %v268 = vmax.f32 %v238, 0.0
    %v269 = vmax.f32 %v240, 0.0
    %v270 = vmax.f32 %v243, 0.0
    %v271 = vmax.f32 %v245, 0.0
    %v272 = vmax.f32 %v248, 0.0
    %v273 = vmax.f32 %v250, 0.0
    %v274 = vmax.f32 %v253, 0.0
    %v275 = vmax.f32 %v255, 0.0
    %v276 = vmax.f32 %v258, 0.0
    %v277 = vmax.f32 %v260, 0.0
    %v278 = vpack.c.bf16 %v263, %v262
    %v279 = vpack.c.bf16 %v265, %v264
    %v280 = vpack.c.bf16 %v267, %v266
    %v281 = vpack.c.bf16 %v269, %v268
    %v282 = vpack.c.bf16 %v271, %v270
    %v283 = vpack.c.bf16 %v273, %v272
    %v284 = vpack.c.bf16 %v275, %v274
    %v285 = vpack.c.bf16 %v277, %v276
    %287 = vset.pattern.permute.xlu0 0
    %288 = vperm.xlu0 %287, %v84
    %v289 = vpop.permute.xlu0 %288
    %292 = vset.pattern.permute.xlu0 0
    %293 = vperm.xlu0 %292, %v85
    %v294 = vpop.permute.xlu0 %293
    %297 = vset.pattern.permute.xlu0 0
    %298 = vperm.xlu0 %297, %v86
    %v299 = vpop.permute.xlu0 %298
    %302 = vset.pattern.permute.xlu0 0
    %303 = vperm.xlu0 %302, %v87
    %v304 = vpop.permute.xlu0 %303
    %307 = vset.pattern.permute.xlu0 0
    %308 = vperm.xlu0 %307, %v88
    %v309 = vpop.permute.xlu0 %308
    %312 = vset.pattern.permute.xlu0 0
    %313 = vperm.xlu0 %312, %v89
    %v314 = vpop.permute.xlu0 %313
    %317 = vset.pattern.permute.xlu0 0
    %318 = vperm.xlu0 %317, %v90
    %v319 = vpop.permute.xlu0 %318
    %322 = vset.pattern.permute.xlu0 0
    %323 = vperm.xlu0 %322, %v91
    %v324 = vpop.permute.xlu0 %323
    %327 = vset.pattern.permute.xlu0 0
    %328 = vperm.xlu0 %327, %v92
    %v329 = vpop.permute.xlu0 %328
    %332 = vset.pattern.permute.xlu0 0
    %333 = vperm.xlu0 %332, %v93
    %v334 = vpop.permute.xlu0 %333
    %337 = vset.pattern.permute.xlu0 0
    %338 = vperm.xlu0 %337, %v94
    %v339 = vpop.permute.xlu0 %338
    %342 = vset.pattern.permute.xlu0 0
    %343 = vperm.xlu0 %342, %v95
    %v344 = vpop.permute.xlu0 %343
    %347 = vset.pattern.permute.xlu0 0
    %348 = vperm.xlu0 %347, %v96
    %v349 = vpop.permute.xlu0 %348
    %352 = vset.pattern.permute.xlu0 0
    %353 = vperm.xlu0 %352, %v97
    %v354 = vpop.permute.xlu0 %353
    %357 = vset.pattern.permute.xlu0 0
    %358 = vperm.xlu0 %357, %v98
    %v359 = vpop.permute.xlu0 %358
    %362 = vset.pattern.permute.xlu0 0
    %363 = vperm.xlu0 %362, %v99
    %v364 = vpop.permute.xlu0 %363
    %v382 = vunpack.c.l.b16 %v68
    %v383 = vunpack.c.l.b16 %v69
    %v384 = vunpack.c.l.b16 %v70
    %v385 = vunpack.c.l.b16 %v71
    %v386 = vunpack.c.l.b16 %v72
    %v387 = vunpack.c.l.b16 %v73
    %v388 = vunpack.c.l.b16 %v74
    %v389 = vunpack.c.l.b16 %v75
    %v390 = vunpack.c.l.b16 %v76
    %v391 = vunpack.c.l.b16 %v77
    %v392 = vunpack.c.l.b16 %v78
    %v393 = vunpack.c.l.b16 %v79
    %v394 = vunpack.c.l.b16 %v80
    %v395 = vunpack.c.l.b16 %v81
    %v396 = vunpack.c.l.b16 %v82
    %v397 = vunpack.c.l.b16 %v83
    %v398 = vpack.c.b16 %v383, %v382
    %v399 = vpack.c.b16 %v385, %v384
    %v400 = vpack.c.b16 %v387, %v386
    %v401 = vpack.c.b16 %v389, %v388
    %v402 = vpack.c.b16 %v391, %v390
    %v403 = vpack.c.b16 %v393, %v392
    %v404 = vpack.c.b16 %v395, %v394
    %v405 = vpack.c.b16 %v397, %v396
    %414 = vmatpush.bf16.msra.mxu0 %v285
    %415 = vmatpush.bf16.msra.mxu0 %v284
    %416 = vmatpush.bf16.msra.mxu0 %v283
    %417 = vmatpush.bf16.msra.mxu0 %v282
    %418 = vmatpush.bf16.msra.mxu0 %v281
    %419 = vmatpush.bf16.msra.mxu0 %v280
    %420 = vmatpush.bf16.msra.mxu0 %v279
    %421 = vmatpush.bf16.msra.mxu0 %v278
    %422 = vmatmul.bf16.gmra.mxu0 %v398
    %v423 = vpop.f32.mrf.mxu0
    %v424 = vadd.f32 %v289, %v423
    %v425 = vpop.f32.mrf.mxu0
    %v426 = vadd.f32 %v294, %v425
    %427 = vmatmul.bf16.gmra.mxu0 %v399
    %v428 = vpop.f32.mrf.mxu0
    %v429 = vadd.f32 %v299, %v428
    %v430 = vpop.f32.mrf.mxu0
    %v431 = vadd.f32 %v304, %v430
    %432 = vmatmul.bf16.gmra.mxu0 %v400
    %v433 = vpop.f32.mrf.mxu0
    %v434 = vadd.f32 %v309, %v433
    %v435 = vpop.f32.mrf.mxu0
    %v436 = vadd.f32 %v314, %v435
    %437 = vmatmul.bf16.gmra.mxu0 %v401
    %v438 = vpop.f32.mrf.mxu0
    %v439 = vadd.f32 %v319, %v438
    %v440 = vpop.f32.mrf.mxu0
    %v441 = vadd.f32 %v324, %v440
    %442 = vmatmul.bf16.gmra.mxu0 %v402
    %v443 = vpop.f32.mrf.mxu0
    %v444 = vadd.f32 %v329, %v443
    %v445 = vpop.f32.mrf.mxu0
    %v446 = vadd.f32 %v334, %v445
    %447 = vmatmul.bf16.gmra.mxu0 %v403
    %v448 = vpop.f32.mrf.mxu0
    %v449 = vadd.f32 %v339, %v448
    %v450 = vpop.f32.mrf.mxu0
    %v451 = vadd.f32 %v344, %v450
    %452 = vmatmul.bf16.gmra.mxu0 %v404
    %v453 = vpop.f32.mrf.mxu0
    %v454 = vadd.f32 %v349, %v453
    %v455 = vpop.f32.mrf.mxu0
    %v456 = vadd.f32 %v354, %v455
    %457 = vmatmul.bf16.gmra.mxu0 %v405
    %v458 = vpop.f32.mrf.mxu0
    %v459 = vadd.f32 %v359, %v458
    %v460 = vpop.f32.mrf.mxu0
    %v461 = vadd.f32 %v364, %v460
    %462 = vdwg.mxu0
    %v463 = vmax.f32 %v424, 0.0
    %v464 = vmax.f32 %v426, 0.0
    %v465 = vmax.f32 %v429, 0.0
    %v466 = vmax.f32 %v431, 0.0
    %v467 = vmax.f32 %v434, 0.0
    %v468 = vmax.f32 %v436, 0.0
    %v469 = vmax.f32 %v439, 0.0
    %v470 = vmax.f32 %v441, 0.0
    %v471 = vmax.f32 %v444, 0.0
    %v472 = vmax.f32 %v446, 0.0
    %v473 = vmax.f32 %v449, 0.0
    %v474 = vmax.f32 %v451, 0.0
    %v475 = vmax.f32 %v454, 0.0
    %v476 = vmax.f32 %v456, 0.0
    %v477 = vmax.f32 %v459, 0.0
    %v478 = vmax.f32 %v461, 0.0
    %v479 = vpack.c.bf16 %v464, %v463
    %v480 = vpack.c.bf16 %v466, %v465
    %v481 = vpack.c.bf16 %v468, %v467
    %v482 = vpack.c.bf16 %v470, %v469
    %v483 = vpack.c.bf16 %v472, %v471
    %v484 = vpack.c.bf16 %v474, %v473
    %v485 = vpack.c.bf16 %v476, %v475
    %v486 = vpack.c.bf16 %v478, %v477
    %488 = vset.pattern.permute.xlu0 0
    %489 = vperm.xlu0 %488, %v101
    %v490 = vpop.permute.xlu0 %489
    %492 = vmatpush.bf16.msra.mxu0 %v486
    %493 = vmatpush.bf16.msra.mxu0 %v485
    %494 = vmatpush.bf16.msra.mxu0 %v484
    %495 = vmatpush.bf16.msra.mxu0 %v483
    %496 = vmatpush.bf16.msra.mxu0 %v482
    %497 = vmatpush.bf16.msra.mxu0 %v481
    %498 = vmatpush.bf16.msra.mxu0 %v480
    %499 = vmatpush.bf16.msra.mxu0 %v479
    %500 = vmatmul.bf16.gmra.mxu0 %v100
    %v501 = vpop.f32.mrf.mxu0
    %v502 = vadd.f32 %v490, %v501
    %v503 = vpop.f32.mrf.mxu0
    %504 = vdwg.mxu0
    %505 = vst [vmem:[#allocation2] sm:$0xff] %v502
    // Predicated region
    $region30: #{tpu_custom_call.1} parent=1 // pred_check
      _
    $region31: #{tpu_custom_call.1} parent=1 // pred_check_branch
      %507 = sbr.rel (0) target = $region33
    $region32: #{tpu_custom_call.1} parent=1 // pred_region
      %509 = vsyncadd [#allocation3], 0
      %s511 = sshll.u32 [#allocation2], 4
      %s512 = int_to_ptr.vmem [resolvable:$true] %s511
      %s513 = sshll.u32 %s7, 4
      %s514 = int_to_ptr.hbm [resolvable:$true] %s513
      %516 = dma.vmem_to_hbm [thread:$0]  %s512, 128, %s514, [#allocation3]
    $region33: #{tpu_custom_call.1} parent=1 // pred_fallthru
      _
    // Predicated region
    $region34: #{tpu_custom_call.1} parent=1 // pred_check
      _
    $region35: #{tpu_custom_call.1} parent=1 // pred_check_branch
      %518 = sbr.rel (0) target = $region37
    $region36: #{tpu_custom_call.1} parent=1 // pred_region
      %520 = dma.done [#allocation3], 128
    $region37: #{tpu_custom_call.1} parent=1 // pred_fallthru
      _
    %521 = vsyncpa [#allocation3], 1

</llo_original>
